<compile_context>
chip_gen: v5e
topology: v5e:2x2
jax: 0.10.0
libtpu: 0.0.40
codegen_flags: <defaults>
</compile_context>

<pallas_src>
import numpy as np
from functools import partial

import jax
import jax.numpy as jnp
from jax.experimental import pallas as pl
from jax.experimental.pallas import tpu as pltpu

EPS_BN = 1e-5
_VMEM_SPEC = pl.BlockSpec(memory_space=pltpu.MemorySpace.VMEM)


# ----------------------------------------------------------------------------
# Static slab layout (shared by the host-side packer and the kernel)
# ----------------------------------------------------------------------------
def _round_up(n, m):
    return ((n + m - 1) // m) * m


def _umg_layout(in_size, H, M):
    # Weight slab: each matrix at an 8-aligned row offset, cols [0:ncols].
    w_entries = [
        ("w0", in_size, 2 * H),   # shared-input fc of both branches
        ("w1", 2 * H, 2 * H),     # Gaussian.fc, block-diag
        ("w2", 2 * H, 4 * H),     # mean/var encoders, fused
        ("w3", 4 * H, 4 * M),     # mean/var decoders, block-diag
        ("w45", 6 * H, 2 * M),    # Gaussian.weight over [enc | h2]
        ("w5", 4 * M, M),         # UMG.weight_layer over dec (zero var rows)
    ]
    w_layout = {}
    off = 0
    max_cols = 0
    for name, rows, cols in w_entries:
        w_layout[name] = (off, rows, cols)
        off = _round_up(off + rows, 8)
        max_cols = max(max_cols, cols)
    w_rows = _round_up(off, 8)
    w_cols = _round_up(max_cols, 128)

    # Row slab: every (1, n) param at a 128-aligned lane offset.
    r_entries = [
        ("b0", 2 * H), ("g0", 2 * H), ("be0", 2 * H),
        ("b1", 2 * H), ("g1", 2 * H), ("be1", 2 * H),
        ("b2", 4 * H), ("g23", 4 * H), ("be23", 4 * H),
        ("b3", 4 * M),
        ("g4", 6 * H), ("be4", 6 * H),
        ("b4", 2 * M), ("b5", M),
    ]
    r_layout = {}
    off = 0
    for name, cols in r_entries:
        r_layout[name] = (off, cols)
        off = _round_up(off + cols, 128)
    r_cols = _round_up(off, 128)
    return w_layout, w_rows, w_cols, r_layout, r_cols


# ----------------------------------------------------------------------------
# Fused Pallas kernel
# ----------------------------------------------------------------------------
def make_umg_kernel(in_size, H, M):
    w_layout, _, _, r_layout, _ = _umg_layout(in_size, H, M)

    def kernel(x_ref, w_ref, r_ref, out_ref):
        def W(name):
            off, rows, cols = w_layout[name]
            return w_ref[off:off + rows, 0:cols]

        def R(name):
            off, cols = r_layout[name]
            return r_ref[:, off:off + cols]

        def lin(h, wname, bname):
            return (jnp.dot(h, W(wname), preferred_element_type=jnp.float32)
                    + R(bname))

        def bn(h, g, b):
            # BatchNorm1d, training mode (biased batch variance), FMA form.
            # mu and E[h^2] are independent sublane reductions.
            mu = jnp.mean(h, axis=0, keepdims=True)
            msq = jnp.mean(h * h, axis=0, keepdims=True)
            s = g * jax.lax.rsqrt((msq - mu * mu) + EPS_BN)
            t = b - mu * s
            return h * s + t

        def softmax(l):
            m = jnp.max(l, axis=1, keepdims=True)
            e = jnp.exp(l - m)
            d = jnp.sum(e, axis=1, keepdims=True)
            r = pl.reciprocal(d, approx=True)
            r = r * (2.0 - d * r)          # one Newton step -> f32 accuracy
            return e * r

        x = x_ref[...]

        # Stage 0: h = relu(bn(fc(x))) for both branches.            (B, 2H)
        h = jnp.maximum(bn(lin(x, 'w0', 'b0'), R('g0'), R('be0')), 0.0)
        # Stage 1: h2 = relu(bn1(Gaussian.fc(h))), block-diag.       (B, 2H)
        h2 = jnp.maximum(bn(lin(h, 'w1', 'b1'), R('g1'), R('be1')), 0.0)
        # Stage 2: mean/var encoders of both branches, one push.     (B, 4H)
        #   lanes: [v_mean_h | v_var_h | a_mean_h | a_var_h]
        enc = jnp.maximum(bn(lin(h2, 'w2', 'b2'), R('g23'), R('be23')), 0.0)
        # Stage 3: mean/var decoders, block-diag (+1e-6 folded in).  (B, 4M)
        #   lanes: [v_mean | v_var_pre | a_mean | a_var_pre]
        dec = lin(enc, 'w3', 'b3')

        # Stage 4: bn4 over [enc | h2] (4H = 128 -> layout-free concat),
        # then one (6H, 2M) dot for both branches' Gaussian.weight.  (B, 2M)
        y4 = bn(jnp.concatenate([enc, h2], axis=1), R('g4'), R('be4'))
        glogits = lin(y4, 'w45', 'b4')

        # Stage 5: UMG mixing head over dec (zero rows on var cols). (B, M)
        ulogits = lin(dec, 'w5', 'b5')

        value_weight = softmax(glogits[:, 0:M])
        angle_weight = softmax(glogits[:, M:2 * M])
        weight = softmax(ulogits)

        # Pack all 7 (B, M) outputs into one lane slab (single writeback).
        out_ref[:, 0 * M:1 * M] = dec[:, 0 * M:1 * M]            # value_mean
        out_ref[:, 1 * M:2 * M] = jnp.exp(dec[:, 1 * M:2 * M])   # value_var
        out_ref[:, 2 * M:3 * M] = value_weight
        out_ref[:, 3 * M:4 * M] = dec[:, 2 * M:3 * M]            # angle_mean
        out_ref[:, 4 * M:5 * M] = jnp.exp(dec[:, 3 * M:4 * M])   # angle_var
        out_ref[:, 5 * M:6 * M] = angle_weight
        out_ref[:, 6 * M:7 * M] = weight

    return kernel


# ----------------------------------------------------------------------------
# Host-side one-time parameter packing (numpy; runs once, not per forward)
# ----------------------------------------------------------------------------
def pack_umg_params(vp, ap, wlayer_w, wlayer_b, in_size, H, M):
    wl, wr, wc, rl, rc = _umg_layout(in_size, H, M)
    w_slab = np.zeros((wr, wc), np.float32)
    r_slab = np.zeros((1, rc), np.float32)

    npv = lambda a: np.asarray(a, np.float32)
    Z = lambda r, c: np.zeros((r, c), np.float32)
    hcat = lambda *xs: np.concatenate(xs, axis=1)
    vcat = lambda *xs: np.concatenate(xs, axis=0)

    vp = {k: npv(v) for k, v in vp.items()}
    ap = {k: npv(v) for k, v in ap.items()}
    ww = npv(wlayer_w)
    wb = npv(wlayer_b)

    # --- weights ---
    w0 = hcat(vp['pfc_w'], ap['pfc_w'])                              # (in, 2H)
    w1 = vcat(hcat(vp['gfc_w'], Z(H, H)),
              hcat(Z(H, H), ap['gfc_w']))                            # (2H, 2H)
    w2 = vcat(hcat(vp['me_w'], vp['ve_w'], Z(H, H), Z(H, H)),
              hcat(Z(H, H), Z(H, H), ap['me_w'], ap['ve_w']))        # (2H, 4H)
    w3 = vcat(hcat(vp['md_w'], Z(H, M), Z(H, M), Z(H, M)),
              hcat(Z(H, M), vp['vd_w'], Z(H, M), Z(H, M)),
              hcat(Z(H, M), Z(H, M), ap['md_w'], Z(H, M)),
              hcat(Z(H, M), Z(H, M), Z(H, M), ap['vd_w']))           # (4H, 4M)
    # Stage 4 merged weight over y4 = [v_mh | v_vh | a_mh | a_vh | v_h2 | a_h2]
    w45 = vcat(hcat(vp['ww_w'][0:H],         Z(H, M)),
               hcat(vp['ww_w'][H:2 * H],     Z(H, M)),
               hcat(Z(H, M),                 ap['ww_w'][0:H]),
               hcat(Z(H, M),                 ap['ww_w'][H:2 * H]),
               hcat(vp['ww_w'][2 * H:3 * H], Z(H, M)),
               hcat(Z(H, M),                 ap['ww_w'][2 * H:3 * H]))  # (6H, 2M)
    # Stage 5 over dec = [v_mean | v_var_pre | a_mean | a_var_pre]
    w5 = vcat(ww[0:M], Z(M, M), ww[M:2 * M], Z(M, M))                # (4M, M)

    for name, mat in (("w0", w0), ("w1", w1), ("w2", w2), ("w3", w3),
                      ("w45", w45), ("w5", w5)):
        off, rows, cols = wl[name]
        w_slab[off:off + rows, 0:cols] = mat

    # --- biases / BN affines (constants +1e-6 folded in host-side) ---
    rows = {
        "b0": hcat(vp['pfc_b'], ap['pfc_b']),
        "g0": hcat(vp['pbn_g'], ap['pbn_g']),
        "be0": hcat(vp['pbn_b'], ap['pbn_b']),
        "b1": hcat(vp['gfc_b'], ap['gfc_b']),
        "g1": hcat(vp['bn1_g'], ap['bn1_g']),
        "be1": hcat(vp['bn1_b'], ap['bn1_b']),
        "b2": hcat(vp['me_b'], vp['ve_b'], ap['me_b'], ap['ve_b']),
        "g23": hcat(vp['bn2_g'], vp['bn3_g'], ap['bn2_g'], ap['bn3_g']),
        "be23": hcat(vp['bn2_b'], vp['bn3_b'], ap['bn2_b'], ap['bn3_b']),
        "b3": hcat(vp['md_b'], vp['vd_b'] + 1e-6,
                   ap['md_b'], ap['vd_b'] + 1e-6),
        "g4": hcat(vp['bn4_g'][:, 0:H], vp['bn4_g'][:, H:2 * H],
                   ap['bn4_g'][:, 0:H], ap['bn4_g'][:, H:2 * H],
                   vp['bn4_g'][:, 2 * H:3 * H], ap['bn4_g'][:, 2 * H:3 * H]),
        "be4": hcat(vp['bn4_b'][:, 0:H], vp['bn4_b'][:, H:2 * H],
                    ap['bn4_b'][:, 0:H], ap['bn4_b'][:, H:2 * H],
                    vp['bn4_b'][:, 2 * H:3 * H], ap['bn4_b'][:, 2 * H:3 * H]),
        "b4": hcat(vp['ww_b'], ap['ww_b']) + 1e-6,
        "b5": wb + 1e-6,
    }
    for name, vec in rows.items():
        off, cols = rl[name]
        r_slab[0, off:off + cols] = vec[0]

    return jnp.asarray(w_slab), jnp.asarray(r_slab)


# ----------------------------------------------------------------------------
# Jitted forward: one fused pallas_call, outputs sliced from a single slab.
# ----------------------------------------------------------------------------
@partial(jax.jit, static_argnames=("hidden", "mixture"))
def umg_forward(x, w_slab, r_slab, *, hidden, mixture):
    B, in_size = x.shape
    M = mixture
    out = pl.pallas_call(
        make_umg_kernel(in_size, hidden, mixture),
        out_shape=jax.ShapeDtypeStruct((B, 7 * M), jnp.float32),
        in_specs=[_VMEM_SPEC, _VMEM_SPEC, _VMEM_SPEC],
        out_specs=_VMEM_SPEC,
    )(x, w_slab, r_slab)
    return tuple(out[:, i * M:(i + 1) * M] for i in range(7))


# ----------------------------------------------------------------------------
# Deterministic parameter construction (mimics PyTorch Linear init; BN affine
# params randomized slightly to exercise the per-segment BN / fusion paths).
# ----------------------------------------------------------------------------
def linear_params(key, fan_in, fan_out):
    kw, kb = jax.random.split(key)
    bound = 1.0 / np.sqrt(fan_in)
    w = jax.random.uniform(kw, (fan_in, fan_out), jnp.float32, -bound, bound)
    b = jax.random.uniform(kb, (1, fan_out), jnp.float32, -bound, bound)
    return w, b


def bn_params(key, n):
    kg, kb = jax.random.split(key)
    g = 1.0 + 0.1 * jax.random.normal(kg, (1, n), jnp.float32)
    b = 0.1 * jax.random.normal(kb, (1, n), jnp.float32)
    return g, b


def make_parallel_gaussian_params(key, in_size, hidden, mixture):
    ks = jax.random.split(key, 13)
    p = {}
    p['pfc_w'], p['pfc_b'] = linear_params(ks[0], in_size, hidden)
    p['pbn_g'], p['pbn_b'] = bn_params(ks[1], hidden)
    p['gfc_w'], p['gfc_b'] = linear_params(ks[2], hidden, hidden)
    p['bn1_g'], p['bn1_b'] = bn_params(ks[3], hidden)
    p['me_w'], p['me_b'] = linear_params(ks[4], hidden, hidden)
    p['bn2_g'], p['bn2_b'] = bn_params(ks[5], hidden)
    p['ve_w'], p['ve_b'] = linear_params(ks[6], hidden, hidden)
    p['bn3_g'], p['bn3_b'] = bn_params(ks[7], hidden)
    p['md_w'], p['md_b'] = linear_params(ks[8], hidden, mixture)
    p['vd_w'], p['vd_b'] = linear_params(ks[9], hidden, mixture)
    p['bn4_g'], p['bn4_b'] = bn_params(ks[10], hidden * 3)
    p['ww_w'], p['ww_b'] = linear_params(ks[11], hidden * 3, mixture)
    return p


# ----------------------------------------------------------------------------
# Pure-JAX reference (layer-by-layer, mirrors the PyTorch module exactly)
# ----------------------------------------------------------------------------
def _bn_ref(h, g, b):
    mu = h.mean(0, keepdims=True)
    var = ((h - mu) ** 2).mean(0, keepdims=True)
    return (h - mu) / jnp.sqrt(var + EPS_BN) * g + b


def parallel_gaussian_ref(x, p):
    h = jax.nn.relu(_bn_ref(x @ p['pfc_w'] + p['pfc_b'], p['pbn_g'], p['pbn_b']))
    h2 = jax.nn.relu(_bn_ref(h @ p['gfc_w'] + p['gfc_b'], p['bn1_g'], p['bn1_b']))
    mh = jax.nn.relu(_bn_ref(h2 @ p['me_w'] + p['me_b'], p['bn2_g'], p['bn2_b']))
    vh = jax.nn.relu(_bn_ref(h2 @ p['ve_w'] + p['ve_b'], p['bn3_g'], p['bn3_b']))
    y = _bn_ref(jnp.concatenate((mh, vh, h2), axis=1), p['bn4_g'], p['bn4_b'])
    w = jax.nn.softmax(y @ p['ww_w'] + p['ww_b'] + 1e-6, axis=1)
    mean = mh @ p['md_w'] + p['md_b']
    var = jnp.exp(vh @ p['vd_w'] + p['vd_b'] + 1e-6)
    return mean, var, w


def umg_ref(x, vp, ap, ww, wb):
    vm, vv, vwt = parallel_gaussian_ref(x, vp)
    am, av, awt = parallel_gaussian_ref(x, ap)
    y = jnp.concatenate((vm, am), axis=1)
    w = jax.nn.softmax(y @ ww + wb + 1e-6, axis=1)
    return vm, vv, vwt, am, av, awt, w


# ----------------------------------------------------------------------------
if __name__ == "__main__":
    INPUT_SIZE = 16
    HIDDEN = 32
    MIXTURE = 3
    BATCH = 8

    root = jax.random.PRNGKey(0)
    k_x, k_val, k_ang, k_w = jax.random.split(root, 4)

    x = jax.random.normal(k_x, (BATCH, INPUT_SIZE), jnp.float32)

    value_params = make_parallel_gaussian_params(k_val, INPUT_SIZE, HIDDEN, MIXTURE)
    angle_params = make_parallel_gaussian_params(k_ang, INPUT_SIZE, HIDDEN, MIXTURE)
    wlayer_w, wlayer_b = linear_params(k_w, MIXTURE * 2, MIXTURE)

    # One-time parameter fusion/packing (hoisted out of the forward path).
    w_slab, r_slab = pack_umg_params(value_params, angle_params,
                                     wlayer_w, wlayer_b,
                                     INPUT_SIZE, HIDDEN, MIXTURE)

    outs = umg_forward(x, w_slab, r_slab, hidden=HIDDEN, mixture=MIXTURE)
    outs = jax.block_until_ready(outs)

    refs = umg_ref(x, value_params, angle_params, wlayer_w, wlayer_b)
    for got, want in zip(outs, refs):
        np.testing.assert_allclose(np.asarray(got), np.asarray(want),
                                   rtol=1e-4, atol=1e-4)

    print("KERNEL_OK")
</pallas_src>

<mosaic_0001>
module attributes {stable_mosaic.version = 11 : i64} {
  func.func @kernel(%arg0: memref<8x16xf32, #tpu.memory_space<vmem>>, %arg1: memref<480x128xf32, #tpu.memory_space<vmem>>, %arg2: memref<1x2048xf32, #tpu.memory_space<vmem>>, %arg3: memref<8x21xf32, #tpu.memory_space<vmem>>) attributes {dimension_semantics = [], scalar_prefetch = 0 : i64, scratch_operands = 0 : i64, tpu.core_type = #tpu.core_type<tc>} {
    %c0 = arith.constant 0 : index
    %c0_0 = arith.constant 0 : index
    %0 = vector.load %arg0[%c0, %c0_0] : memref<8x16xf32, #tpu.memory_space<vmem>>, vector<8x16xf32>
    %c0_1 = arith.constant 0 : index
    %c0_2 = arith.constant 0 : index
    %1 = vector.load %arg1[%c0_1, %c0_2] : memref<480x128xf32, #tpu.memory_space<vmem>>, vector<16x64xf32>
    %cst = arith.constant dense<0.000000e+00> : vector<8x64xf32>
    %2 = tpu.matmul %0, %1, %cst {dimension_numbers = #tpu.dot_dimension_numbers<[1], [0], [0], [1], [0, 0, 1, 1], [], []>} : vector<8x16xf32>, vector<16x64xf32>, vector<8x64xf32> -> vector<8x64xf32>
    %c0_3 = arith.constant 0 : index
    %c0_4 = arith.constant 0 : index
    %3 = vector.load %arg2[%c0_3, %c0_4] : memref<1x2048xf32, #tpu.memory_space<vmem>>, vector<1x64xf32>
    %4 = vector.broadcast %3 : vector<1x64xf32> to vector<8x64xf32>
    %5 = arith.addf %2, %4 : vector<8x64xf32>
    %c0_5 = arith.constant 0 : index
    %c128 = arith.constant 128 : index
    %6 = vector.load %arg2[%c0_5, %c128] : memref<1x2048xf32, #tpu.memory_space<vmem>>, vector<1x64xf32>
    %c0_6 = arith.constant 0 : index
    %c256 = arith.constant 256 : index
    %7 = vector.load %arg2[%c0_6, %c256] : memref<1x2048xf32, #tpu.memory_space<vmem>>, vector<1x64xf32>
    %cst_7 = arith.constant dense<0.000000e+00> : vector<64xf32>
    %8 = vector.multi_reduction <add>, %5, %cst_7 [0] : vector<8x64xf32> to vector<64xf32>
    %9 = vector.shape_cast %8 : vector<64xf32> to vector<1x64xf32>
    %cst_8 = arith.constant 8.000000e+00 : f32
    %10 = vector.broadcast %cst_8 : f32 to vector<1x64xf32>
    %11 = arith.divf %9, %10 : vector<1x64xf32>
    %12 = arith.mulf %5, %5 : vector<8x64xf32>
    %cst_9 = arith.constant dense<0.000000e+00> : vector<64xf32>
    %13 = vector.multi_reduction <add>, %12, %cst_9 [0] : vector<8x64xf32> to vector<64xf32>
    %14 = vector.shape_cast %13 : vector<64xf32> to vector<1x64xf32>
    %cst_10 = arith.constant 8.000000e+00 : f32
    %15 = vector.broadcast %cst_10 : f32 to vector<1x64xf32>
    %16 = arith.divf %14, %15 : vector<1x64xf32>
    %17 = arith.mulf %11, %11 : vector<1x64xf32>
    %18 = arith.subf %16, %17 : vector<1x64xf32>
    %cst_11 = arith.constant 9.99999974E-6 : f32
    %19 = vector.broadcast %cst_11 : f32 to vector<1x64xf32>
    %20 = arith.addf %18, %19 : vector<1x64xf32>
    %21 = math.rsqrt %20 : vector<1x64xf32>
    %22 = arith.mulf %6, %21 : vector<1x64xf32>
    %23 = arith.mulf %11, %22 : vector<1x64xf32>
    %24 = arith.subf %7, %23 : vector<1x64xf32>
    %25 = vector.broadcast %22 : vector<1x64xf32> to vector<8x64xf32>
    %26 = arith.mulf %5, %25 : vector<8x64xf32>
    %27 = vector.broadcast %24 : vector<1x64xf32> to vector<8x64xf32>
    %28 = arith.addf %26, %27 : vector<8x64xf32>
    %cst_12 = arith.constant 0.000000e+00 : f32
    %29 = vector.broadcast %cst_12 : f32 to vector<8x64xf32>
    %30 = arith.maximumf %28, %29 : vector<8x64xf32>
    %c16 = arith.constant 16 : index
    %c0_13 = arith.constant 0 : index
    %31 = vector.load %arg1[%c16, %c0_13] : memref<480x128xf32, #tpu.memory_space<vmem>>, vector<64x64xf32>
    %cst_14 = arith.constant dense<0.000000e+00> : vector<8x64xf32>
    %32 = tpu.matmul %30, %31, %cst_14 {dimension_numbers = #tpu.dot_dimension_numbers<[1], [0], [0], [1], [0, 0, 1, 1], [], []>} : vector<8x64xf32>, vector<64x64xf32>, vector<8x64xf32> -> vector<8x64xf32>
    %c0_15 = arith.constant 0 : index
    %c384 = arith.constant 384 : index
    %33 = vector.load %arg2[%c0_15, %c384] : memref<1x2048xf32, #tpu.memory_space<vmem>>, vector<1x64xf32>
    %34 = vector.broadcast %33 : vector<1x64xf32> to vector<8x64xf32>
    %35 = arith.addf %32, %34 : vector<8x64xf32>
    %c0_16 = arith.constant 0 : index
    %c512 = arith.constant 512 : index
    %36 = vector.load %arg2[%c0_16, %c512] : memref<1x2048xf32, #tpu.memory_space<vmem>>, vector<1x64xf32>
    %c0_17 = arith.constant 0 : index
    %c640 = arith.constant 640 : index
    %37 = vector.load %arg2[%c0_17, %c640] : memref<1x2048xf32, #tpu.memory_space<vmem>>, vector<1x64xf32>
    %cst_18 = arith.constant dense<0.000000e+00> : vector<64xf32>
    %38 = vector.multi_reduction <add>, %35, %cst_18 [0] : vector<8x64xf32> to vector<64xf32>
    %39 = vector.shape_cast %38 : vector<64xf32> to vector<1x64xf32>
    %cst_19 = arith.constant 8.000000e+00 : f32
    %40 = vector.broadcast %cst_19 : f32 to vector<1x64xf32>
    %41 = arith.divf %39, %40 : vector<1x64xf32>
    %42 = arith.mulf %35, %35 : vector<8x64xf32>
    %cst_20 = arith.constant dense<0.000000e+00> : vector<64xf32>
    %43 = vector.multi_reduction <add>, %42, %cst_20 [0] : vector<8x64xf32> to vector<64xf32>
    %44 = vector.shape_cast %43 : vector<64xf32> to vector<1x64xf32>
    %cst_21 = arith.constant 8.000000e+00 : f32
    %45 = vector.broadcast %cst_21 : f32 to vector<1x64xf32>
    %46 = arith.divf %44, %45 : vector<1x64xf32>
    %47 = arith.mulf %41, %41 : vector<1x64xf32>
    %48 = arith.subf %46, %47 : vector<1x64xf32>
    %cst_22 = arith.constant 9.99999974E-6 : f32
    %49 = vector.broadcast %cst_22 : f32 to vector<1x64xf32>
    %50 = arith.addf %48, %49 : vector<1x64xf32>
    %51 = math.rsqrt %50 : vector<1x64xf32>
    %52 = arith.mulf %36, %51 : vector<1x64xf32>
    %53 = arith.mulf %41, %52 : vector<1x64xf32>
    %54 = arith.subf %37, %53 : vector<1x64xf32>
    %55 = vector.broadcast %52 : vector<1x64xf32> to vector<8x64xf32>
    %56 = arith.mulf %35, %55 : vector<8x64xf32>
    %57 = vector.broadcast %54 : vector<1x64xf32> to vector<8x64xf32>
    %58 = arith.addf %56, %57 : vector<8x64xf32>
    %cst_23 = arith.constant 0.000000e+00 : f32
    %59 = vector.broadcast %cst_23 : f32 to vector<8x64xf32>
    %60 = arith.maximumf %58, %59 : vector<8x64xf32>
    %c80 = arith.constant 80 : index
    %c0_24 = arith.constant 0 : index
    %61 = vector.load %arg1[%c80, %c0_24] : memref<480x128xf32, #tpu.memory_space<vmem>>, vector<64x128xf32>
    %cst_25 = arith.constant dense<0.000000e+00> : vector<8x128xf32>
    %62 = tpu.matmul %60, %61, %cst_25 {dimension_numbers = #tpu.dot_dimension_numbers<[1], [0], [0], [1], [0, 0, 1, 1], [], []>} : vector<8x64xf32>, vector<64x128xf32>, vector<8x128xf32> -> vector<8x128xf32>
    %c0_26 = arith.constant 0 : index
    %c768 = arith.constant 768 : index
    %63 = vector.load %arg2[%c0_26, %c768] : memref<1x2048xf32, #tpu.memory_space<vmem>>, vector<1x128xf32>
    %64 = vector.broadcast %63 : vector<1x128xf32> to vector<8x128xf32>
    %65 = arith.addf %62, %64 : vector<8x128xf32>
    %c0_27 = arith.constant 0 : index
    %c896 = arith.constant 896 : index
    %66 = vector.load %arg2[%c0_27, %c896] : memref<1x2048xf32, #tpu.memory_space<vmem>>, vector<1x128xf32>
    %c0_28 = arith.constant 0 : index
    %c1024 = arith.constant 1024 : index
    %67 = vector.load %arg2[%c0_28, %c1024] : memref<1x2048xf32, #tpu.memory_space<vmem>>, vector<1x128xf32>
    %cst_29 = arith.constant dense<0.000000e+00> : vector<128xf32>
    %68 = vector.multi_reduction <add>, %65, %cst_29 [0] : vector<8x128xf32> to vector<128xf32>
    %69 = vector.shape_cast %68 : vector<128xf32> to vector<1x128xf32>
    %cst_30 = arith.constant 8.000000e+00 : f32
    %70 = vector.broadcast %cst_30 : f32 to vector<1x128xf32>
    %71 = arith.divf %69, %70 : vector<1x128xf32>
    %72 = arith.mulf %65, %65 : vector<8x128xf32>
    %cst_31 = arith.constant dense<0.000000e+00> : vector<128xf32>
    %73 = vector.multi_reduction <add>, %72, %cst_31 [0] : vector<8x128xf32> to vector<128xf32>
    %74 = vector.shape_cast %73 : vector<128xf32> to vector<1x128xf32>
    %cst_32 = arith.constant 8.000000e+00 : f32
    %75 = vector.broadcast %cst_32 : f32 to vector<1x128xf32>
    %76 = arith.divf %74, %75 : vector<1x128xf32>
    %77 = arith.mulf %71, %71 : vector<1x128xf32>
    %78 = arith.subf %76, %77 : vector<1x128xf32>
    %cst_33 = arith.constant 9.99999974E-6 : f32
    %79 = vector.broadcast %cst_33 : f32 to vector<1x128xf32>
    %80 = arith.addf %78, %79 : vector<1x128xf32>
    %81 = math.rsqrt %80 : vector<1x128xf32>
    %82 = arith.mulf %66, %81 : vector<1x128xf32>
    %83 = arith.mulf %71, %82 : vector<1x128xf32>
    %84 = arith.subf %67, %83 : vector<1x128xf32>
    %85 = vector.broadcast %82 : vector<1x128xf32> to vector<8x128xf32>
    %86 = arith.mulf %65, %85 : vector<8x128xf32>
    %87 = vector.broadcast %84 : vector<1x128xf32> to vector<8x128xf32>
    %88 = arith.addf %86, %87 : vector<8x128xf32>
    %cst_34 = arith.constant 0.000000e+00 : f32
    %89 = vector.broadcast %cst_34 : f32 to vector<8x128xf32>
    %90 = arith.maximumf %88, %89 : vector<8x128xf32>
    %c144 = arith.constant 144 : index
    %c0_35 = arith.constant 0 : index
    %91 = vector.load %arg1[%c144, %c0_35] : memref<480x128xf32, #tpu.memory_space<vmem>>, vector<128x12xf32>
    %cst_36 = arith.constant dense<0.000000e+00> : vector<8x12xf32>
    %92 = tpu.matmul %90, %91, %cst_36 {dimension_numbers = #tpu.dot_dimension_numbers<[1], [0], [0], [1], [0, 0, 1, 1], [], []>} : vector<8x128xf32>, vector<128x12xf32>, vector<8x12xf32> -> vector<8x12xf32>
    %c0_37 = arith.constant 0 : index
    %c1152 = arith.constant 1152 : index
    %93 = vector.load %arg2[%c0_37, %c1152] : memref<1x2048xf32, #tpu.memory_space<vmem>>, vector<1x12xf32>
    %94 = vector.broadcast %93 : vector<1x12xf32> to vector<8x12xf32>
    %95 = arith.addf %92, %94 : vector<8x12xf32>
    %96 = tpu.concatenate %90, %60 in 1 : vector<8x128xf32>, vector<8x64xf32> -> vector<8x192xf32>
    %c0_38 = arith.constant 0 : index
    %c1280 = arith.constant 1280 : index
    %97 = vector.load %arg2[%c0_38, %c1280] : memref<1x2048xf32, #tpu.memory_space<vmem>>, vector<1x192xf32>
    %c0_39 = arith.constant 0 : index
    %c1536 = arith.constant 1536 : index
    %98 = vector.load %arg2[%c0_39, %c1536] : memref<1x2048xf32, #tpu.memory_space<vmem>>, vector<1x192xf32>
    %cst_40 = arith.constant dense<0.000000e+00> : vector<192xf32>
    %99 = vector.multi_reduction <add>, %96, %cst_40 [0] : vector<8x192xf32> to vector<192xf32>
    %100 = vector.shape_cast %99 : vector<192xf32> to vector<1x192xf32>
    %cst_41 = arith.constant 8.000000e+00 : f32
    %101 = vector.broadcast %cst_41 : f32 to vector<1x192xf32>
    %102 = arith.divf %100, %101 : vector<1x192xf32>
    %103 = arith.mulf %96, %96 : vector<8x192xf32>
    %cst_42 = arith.constant dense<0.000000e+00> : vector<192xf32>
    %104 = vector.multi_reduction <add>, %103, %cst_42 [0] : vector<8x192xf32> to vector<192xf32>
    %105 = vector.shape_cast %104 : vector<192xf32> to vector<1x192xf32>
    %cst_43 = arith.constant 8.000000e+00 : f32
    %106 = vector.broadcast %cst_43 : f32 to vector<1x192xf32>
    %107 = arith.divf %105, %106 : vector<1x192xf32>
    %108 = arith.mulf %102, %102 : vector<1x192xf32>
    %109 = arith.subf %107, %108 : vector<1x192xf32>
    %cst_44 = arith.constant 9.99999974E-6 : f32
    %110 = vector.broadcast %cst_44 : f32 to vector<1x192xf32>
    %111 = arith.addf %109, %110 : vector<1x192xf32>
    %112 = math.rsqrt %111 : vector<1x192xf32>
    %113 = arith.mulf %97, %112 : vector<1x192xf32>
    %114 = arith.mulf %102, %113 : vector<1x192xf32>
    %115 = arith.subf %98, %114 : vector<1x192xf32>
    %116 = vector.broadcast %113 : vector<1x192xf32> to vector<8x192xf32>
    %117 = arith.mulf %96, %116 : vector<8x192xf32>
    %118 = vector.broadcast %115 : vector<1x192xf32> to vector<8x192xf32>
    %119 = arith.addf %117, %118 : vector<8x192xf32>
    %c272 = arith.constant 272 : index
    %c0_45 = arith.constant 0 : index
    %120 = vector.load %arg1[%c272, %c0_45] : memref<480x128xf32, #tpu.memory_space<vmem>>, vector<192x6xf32>
    %cst_46 = arith.constant dense<0.000000e+00> : vector<8x6xf32>
    %121 = tpu.matmul %119, %120, %cst_46 {dimension_numbers = #tpu.dot_dimension_numbers<[1], [0], [0], [1], [0, 0, 1, 1], [], []>} : vector<8x192xf32>, vector<192x6xf32>, vector<8x6xf32> -> vector<8x6xf32>
    %c0_47 = arith.constant 0 : index
    %c1792 = arith.constant 1792 : index
    %122 = vector.load %arg2[%c0_47, %c1792] : memref<1x2048xf32, #tpu.memory_space<vmem>>, vector<1x6xf32>
    %123 = vector.broadcast %122 : vector<1x6xf32> to vector<8x6xf32>
    %124 = arith.addf %121, %123 : vector<8x6xf32>
    %c464 = arith.constant 464 : index
    %c0_48 = arith.constant 0 : index
    %125 = vector.load %arg1[%c464, %c0_48] : memref<480x128xf32, #tpu.memory_space<vmem>>, vector<12x3xf32>
    %cst_49 = arith.constant dense<0.000000e+00> : vector<8x3xf32>
    %126 = tpu.matmul %95, %125, %cst_49 {dimension_numbers = #tpu.dot_dimension_numbers<[1], [0], [0], [1], [0, 0, 1, 1], [], []>} : vector<8x12xf32>, vector<12x3xf32>, vector<8x3xf32> -> vector<8x3xf32>
    %c0_50 = arith.constant 0 : index
    %c1920 = arith.constant 1920 : index
    %127 = vector.load %arg2[%c0_50, %c1920] : memref<1x2048xf32, #tpu.memory_space<vmem>>, vector<1x3xf32>
    %128 = vector.broadcast %127 : vector<1x3xf32> to vector<8x3xf32>
    %129 = arith.addf %126, %128 : vector<8x3xf32>
    %130 = vector.extract_strided_slice %124 {offsets = [0, 0], sizes = [8, 3], strides = [1, 1]} : vector<8x6xf32> to vector<8x3xf32>
    %cst_51 = arith.constant dense<0xFF800000> : vector<8xf32>
    %131 = vector.multi_reduction <maximumf>, %130, %cst_51 [1] : vector<8x3xf32> to vector<8xf32>
    %132 = vector.shape_cast %131 : vector<8xf32> to vector<8x1xf32>
    %133 = vector.broadcast %132 : vector<8x1xf32> to vector<8x3xf32>
    %134 = arith.subf %130, %133 : vector<8x3xf32>
    %135 = math.exp %134 : vector<8x3xf32>
    %cst_52 = arith.constant dense<0.000000e+00> : vector<8xf32>
    %136 = vector.multi_reduction <add>, %135, %cst_52 [1] : vector<8x3xf32> to vector<8xf32>
    %137 = vector.shape_cast %136 : vector<8xf32> to vector<8x1xf32>
    %138 = tpu.reciprocal %137 {approx = true} : vector<8x1xf32> -> vector<8x1xf32>
    %139 = arith.mulf %137, %138 : vector<8x1xf32>
    %cst_53 = arith.constant 2.000000e+00 : f32
    %140 = vector.broadcast %cst_53 : f32 to vector<8x1xf32>
    %141 = arith.subf %140, %139 : vector<8x1xf32>
    %142 = arith.mulf %138, %141 : vector<8x1xf32>
    %143 = vector.broadcast %142 : vector<8x1xf32> to vector<8x3xf32>
    %144 = arith.mulf %135, %143 : vector<8x3xf32>
    %145 = vector.extract_strided_slice %124 {offsets = [0, 3], sizes = [8, 3], strides = [1, 1]} : vector<8x6xf32> to vector<8x3xf32>
    %cst_54 = arith.constant dense<0xFF800000> : vector<8xf32>
    %146 = vector.multi_reduction <maximumf>, %145, %cst_54 [1] : vector<8x3xf32> to vector<8xf32>
    %147 = vector.shape_cast %146 : vector<8xf32> to vector<8x1xf32>
    %148 = vector.broadcast %147 : vector<8x1xf32> to vector<8x3xf32>
    %149 = arith.subf %145, %148 : vector<8x3xf32>
    %150 = math.exp %149 : vector<8x3xf32>
    %cst_55 = arith.constant dense<0.000000e+00> : vector<8xf32>
    %151 = vector.multi_reduction <add>, %150, %cst_55 [1] : vector<8x3xf32> to vector<8xf32>
    %152 = vector.shape_cast %151 : vector<8xf32> to vector<8x1xf32>
    %153 = tpu.reciprocal %152 {approx = true} : vector<8x1xf32> -> vector<8x1xf32>
    %154 = arith.mulf %152, %153 : vector<8x1xf32>
    %cst_56 = arith.constant 2.000000e+00 : f32
    %155 = vector.broadcast %cst_56 : f32 to vector<8x1xf32>
    %156 = arith.subf %155, %154 : vector<8x1xf32>
    %157 = arith.mulf %153, %156 : vector<8x1xf32>
    %158 = vector.broadcast %157 : vector<8x1xf32> to vector<8x3xf32>
    %159 = arith.mulf %150, %158 : vector<8x3xf32>
    %cst_57 = arith.constant dense<0xFF800000> : vector<8xf32>
    %160 = vector.multi_reduction <maximumf>, %129, %cst_57 [1] : vector<8x3xf32> to vector<8xf32>
    %161 = vector.shape_cast %160 : vector<8xf32> to vector<8x1xf32>
    %162 = vector.broadcast %161 : vector<8x1xf32> to vector<8x3xf32>
    %163 = arith.subf %129, %162 : vector<8x3xf32>
    %164 = math.exp %163 : vector<8x3xf32>
    %cst_58 = arith.constant dense<0.000000e+00> : vector<8xf32>
    %165 = vector.multi_reduction <add>, %164, %cst_58 [1] : vector<8x3xf32> to vector<8xf32>
    %166 = vector.shape_cast %165 : vector<8xf32> to vector<8x1xf32>
    %167 = tpu.reciprocal %166 {approx = true} : vector<8x1xf32> -> vector<8x1xf32>
    %168 = arith.mulf %166, %167 : vector<8x1xf32>
    %cst_59 = arith.constant 2.000000e+00 : f32
    %169 = vector.broadcast %cst_59 : f32 to vector<8x1xf32>
    %170 = arith.subf %169, %168 : vector<8x1xf32>
    %171 = arith.mulf %167, %170 : vector<8x1xf32>
    %172 = vector.broadcast %171 : vector<8x1xf32> to vector<8x3xf32>
    %173 = arith.mulf %164, %172 : vector<8x3xf32>
    %174 = vector.extract_strided_slice %95 {offsets = [0, 0], sizes = [8, 3], strides = [1, 1]} : vector<8x12xf32> to vector<8x3xf32>
    %c0_60 = arith.constant 0 : index
    %c0_61 = arith.constant 0 : index
    %175 = vector.load %arg3[%c0_60, %c0_61] : memref<8x21xf32, #tpu.memory_space<vmem>>, vector<8x3xf32>
    tpu.vector_store %arg3[%c0_60, %c0_61], %174 {strides = array<i32>} : memref<8x21xf32, #tpu.memory_space<vmem>>, vector<8x3xf32>,
    %176 = vector.extract_strided_slice %95 {offsets = [0, 3], sizes = [8, 3], strides = [1, 1]} : vector<8x12xf32> to vector<8x3xf32>
    %177 = math.exp %176 : vector<8x3xf32>
    %c0_62 = arith.constant 0 : index
    %c3 = arith.constant 3 : index
    %178 = vector.load %arg3[%c0_62, %c3] : memref<8x21xf32, #tpu.memory_space<vmem>>, vector<8x3xf32>
    tpu.vector_store %arg3[%c0_62, %c3], %177 {strides = array<i32>} : memref<8x21xf32, #tpu.memory_space<vmem>>, vector<8x3xf32>,
    %c0_63 = arith.constant 0 : index
    %c6 = arith.constant 6 : index
    %179 = vector.load %arg3[%c0_63, %c6] : memref<8x21xf32, #tpu.memory_space<vmem>>, vector<8x3xf32>
    tpu.vector_store %arg3[%c0_63, %c6], %144 {strides = array<i32>} : memref<8x21xf32, #tpu.memory_space<vmem>>, vector<8x3xf32>,
    %180 = vector.extract_strided_slice %95 {offsets = [0, 6], sizes = [8, 3], strides = [1, 1]} : vector<8x12xf32> to vector<8x3xf32>
    %c0_64 = arith.constant 0 : index
    %c9 = arith.constant 9 : index
    %181 = vector.load %arg3[%c0_64, %c9] : memref<8x21xf32, #tpu.memory_space<vmem>>, vector<8x3xf32>
    tpu.vector_store %arg3[%c0_64, %c9], %180 {strides = array<i32>} : memref<8x21xf32, #tpu.memory_space<vmem>>, vector<8x3xf32>,
    %182 = vector.extract_strided_slice %95 {offsets = [0, 9], sizes = [8, 3], strides = [1, 1]} : vector<8x12xf32> to vector<8x3xf32>
    %183 = math.exp %182 : vector<8x3xf32>
    %c0_65 = arith.constant 0 : index
    %c12 = arith.constant 12 : index
    %184 = vector.load %arg3[%c0_65, %c12] : memref<8x21xf32, #tpu.memory_space<vmem>>, vector<8x3xf32>
    tpu.vector_store %arg3[%c0_65, %c12], %183 {strides = array<i32>} : memref<8x21xf32, #tpu.memory_space<vmem>>, vector<8x3xf32>,
    %c0_66 = arith.constant 0 : index
    %c15 = arith.constant 15 : index
    %185 = vector.load %arg3[%c0_66, %c15] : memref<8x21xf32, #tpu.memory_space<vmem>>, vector<8x3xf32>
    tpu.vector_store %arg3[%c0_66, %c15], %159 {strides = array<i32>} : memref<8x21xf32, #tpu.memory_space<vmem>>, vector<8x3xf32>,
    %c0_67 = arith.constant 0 : index
    %c18 = arith.constant 18 : index
    %186 = vector.load %arg3[%c0_67, %c18] : memref<8x21xf32, #tpu.memory_space<vmem>>, vector<8x3xf32>
    tpu.vector_store %arg3[%c0_67, %c18], %173 {strides = array<i32>} : memref<8x21xf32, #tpu.memory_space<vmem>>, vector<8x3xf32>,
    return
  }
}

</mosaic_0001>

<llo_original>
// kernel: umg_forward.1
$region0: #{umg_forward.1}
  #allocation0 [shape = 'u32[]', space=smem, size = 0x4, offset = 0x4, fixed_abs, tag = 'smem constant byte address 0x4 - core index']
  #allocation1 [shape = 'u32[72,128]{1,0:T(1,128)}', space=vmem, size = 0x9000, scoped, tag = 'internal scratch']
  %s0 = inlined_call_operand.hbm [shape: f32[8,16], index: 0, kind: input, shape index: {}]
  %s1 = inlined_call_operand.hbm [shape: f32[480,128], index: 1, kind: input, shape index: {}]
  %s2 = inlined_call_operand.hbm [shape: f32[1,2048], index: 2, kind: input, shape index: {}]
  %s3 = inlined_call_operand.vmem [shape: f32[8,21], index: 3, kind: output, shape index: {}]
  %s4 = sld [smem:[#allocation0]]
  $region34: #{umg_forward.1} parent=0
    _
  %s6 = ssub.s32 1, %s4
  %s7 = scalar_select 0, %s6, %s4
  $region1: #{umg_forward.1} parent=0
    #allocation2 [shape = 'u8[4096]{0}', space=vmem, size = 0x1000, scoped, tag = 'input window, operand 0, single buffered']
    #allocation3 [shape = 's32[1]{0}', space=sflag, size = 0x4, scoped, tag = 'scoped memory for umg_forward.1']
    #allocation4 [shape = 'u8[245760]{0}', space=vmem, size = 0x3c000, scoped, tag = 'input window, operand 1, single buffered']
    #allocation5 [shape = 's32[1]{0}', space=sflag, size = 0x4, scoped, tag = 'scoped memory for umg_forward.1']
    #allocation6 [shape = 'u8[8192]{0}', space=vmem, size = 0x2000, scoped, tag = 'input window, operand 2, single buffered']
    %8 = vsyncpa [#allocation3], 0
    %9 = vsyncpa [#allocation5], 0
    // Predicated region
    $region2: #{umg_forward.1} parent=1 // pred_check
      _
    $region3: #{umg_forward.1} parent=1 // pred_check_branch
      %11 = sbr.rel (0) target = $region5
    $region4: #{umg_forward.1} parent=1 // pred_region
      %13 = vsyncadd [#allocation3], 0
      %s15 = sshll.u32 %s0, 4
      %s16 = int_to_ptr.hbm [resolvable:$true] %s15
      %s17 = sshll.u32 [#allocation2], 4
      %s18 = int_to_ptr.vmem [resolvable:$true] %s17
      %20 = dma.hbm_to_vmem [thread:$0]  %s16, 128, %s18, [#allocation3]
    $region5: #{umg_forward.1} parent=1 // pred_fallthru
      _
    // Predicated region
    $region6: #{umg_forward.1} parent=1 // pred_check
      _
    $region7: #{umg_forward.1} parent=1 // pred_check_branch
      %22 = sbr.rel (0) target = $region9
    $region8: #{umg_forward.1} parent=1 // pred_region
      %24 = vsyncadd [#allocation5], 0
      %s25 = sshll.u32 %s1, 4
      %s26 = int_to_ptr.hbm [resolvable:$true] %s25
      %s27 = sshll.u32 [#allocation4], 4
      %s28 = int_to_ptr.vmem [resolvable:$true] %s27
      %33 = dma.hbm_to_vmem [thread:$0]  %s26, 7680, %s28, [#allocation5], 128, 128, 8
    $region9: #{umg_forward.1} parent=1 // pred_fallthru
      _
    // Predicated region
    $region10: #{umg_forward.1} parent=1 // pred_check
      _
    $region11: #{umg_forward.1} parent=1 // pred_check_branch
      %35 = sbr.rel (0) target = $region13
    $region12: #{umg_forward.1} parent=1 // pred_region
      %37 = vsyncadd [#allocation5], 0
      %s39 = sshll.u32 %s2, 4
      %s40 = int_to_ptr.hbm [resolvable:$true] %s39
      %s41 = sshll.u32 [#allocation6], 4
      %s42 = int_to_ptr.vmem [resolvable:$true] %s41
      %44 = dma.hbm_to_vmem [thread:$0]  %s40, 256, %s42, [#allocation5]
    $region13: #{umg_forward.1} parent=1 // pred_fallthru
      _
    // Predicated region
    $region14: #{umg_forward.1} parent=1 // pred_check
      _
    $region15: #{umg_forward.1} parent=1 // pred_check_branch
      %46 = sbr.rel (0) target = $region17
    $region16: #{umg_forward.1} parent=1 // pred_region
      %48 = dma.done [#allocation3], 128
    $region17: #{umg_forward.1} parent=1 // pred_fallthru
      _
    // Predicated region
    $region18: #{umg_forward.1} parent=1 // pred_check
      _
    $region19: #{umg_forward.1} parent=1 // pred_check_branch
      %50 = sbr.rel (0) target = $region21
    $region20: #{umg_forward.1} parent=1 // pred_region
      %52 = dma.done [#allocation5], 7680
    $region21: #{umg_forward.1} parent=1 // pred_fallthru
      _
    // Predicated region
    $region22: #{umg_forward.1} parent=1 // pred_check
      _
    $region23: #{umg_forward.1} parent=1 // pred_check_branch
      %54 = sbr.rel (0) target = $region25
    $region24: #{umg_forward.1} parent=1 // pred_region
      %56 = dma.done [#allocation5], 256
    $region25: #{umg_forward.1} parent=1 // pred_fallthru
      _
    %v57 = vld [vmem:[#allocation2] sm:$0xff]
    %v58 = vld [vmem:[#allocation4] sm:$0xff]
    %v59 = vld [vmem:[#allocation4 + $0x8] sm:$0xff]
    %v60 = vld [vmem:[#allocation6] sm:$0x1]
    %v62 = vperm.slane %v60, 0
    %vm64 = vcmask 130048
    %v66 = vsel %vm64, %v57, 0
    %68 = vmatpush.msra.mxu0 0.0
    %69 = vmatpush.msra.mxu0 0.0
    %70 = vmatpush.msra.mxu0 0.0
    %71 = vmatpush.msra.mxu0 0.0
    %72 = vmatpush.msra.mxu0 0.0
    %73 = vmatpush.msra.mxu0 0.0
    %74 = vmatpush.msra.mxu0 0.0
    %75 = vmatpush.msra.mxu0 0.0
    %76 = vmatpush.msra.mxu0 0.0
    %77 = vmatpush.msra.mxu0 0.0
    %78 = vmatpush.msra.mxu0 0.0
    %79 = vmatpush.msra.mxu0 0.0
    %80 = vmatpush.msra.mxu0 0.0
    %81 = vmatpush.msra.mxu0 0.0
    %82 = vmatpush.msra.mxu0 %v59
    %83 = vmatpush.msra.mxu0 %v58
    %84 = vmatmul.f32.gmra.mxu0 %v66
    %v85 = vpop.f32.mrf.mxu0
    %v86 = vadd.f32 %v62, %v85
    %87 = vdwg.mxu0
    %v88 = vld [vmem:[#allocation6 + $0x1] sm:$0x1]
    %v89 = vld [vmem:[#allocation6 + $0x2] sm:$0x1]
    %vm90 = vcmask 523264
    %v91 = vsel %vm90, %v86, 0.0
    %v92 = vrot.slane %v91, 4
    %v93 = vadd.f32 %v91, %v92
    %v94 = vrot.slane %v93, 2
    %v95 = vadd.f32 %v93, %v94
    %v96 = vrot.slane %v95, 1
    %v97 = vadd.f32 %v95, %v96
    %v98 = vrcp.pop 8.0
    %v99 = vmul.f32 8.0, %v98
    %v100 = vsub.f32 1.0, %v99
    %v101 = vmul.f32 %v98, %v100
    %v102 = vadd.f32 %v98, %v101
    %vm103 = vweird.f32 %v98
    %v104 = vsel %vm103, %v98, %v102
    %v105 = vmul.f32 %v97, %v104
    %v106 = vmul.f32 %v86, %v86
    %v107 = vsel %vm90, %v106, 0.0
    %v108 = vrot.slane %v107, 4
    %v109 = vadd.f32 %v107, %v108
    %v110 = vrot.slane %v109, 2
    %v111 = vadd.f32 %v109, %v110
    %v112 = vrot.slane %v111, 1
    %v113 = vadd.f32 %v111, %v112
    %v114 = vmul.f32 %v113, %v104
    %v115 = vmul.f32 %v105, %v105
    %v116 = vsub.f32 %v114, %v115
    %v117 = vadd.f32 %v116, 1e-05
    %v118 = vrsqrt.pop %v117
    %v119 = vmul.f32 %v118, %v117
    %v120 = vmul.f32 %v119, %v118
    %v121 = vmul.f32 0.5, %v120
    %v122 = vsub.f32 1.5, %v121
    %v123 = vmul.f32 %v118, %v122
    %vm124 = vweird.f32 %v117
    %vm125 = vweird.f32 %v118
    %vm126 = vmor %vm124, %vm125
    %v127 = vsel %vm126, %v118, %v123
    %v128 = vmul.f32 %v88, %v127
    %v129 = vmul.f32 %v105, %v128
    %v130 = vsub.f32 %v89, %v129
    %v132 = vperm.slane %v128, 0
    %v134 = vmul.f32 %v86, %v132
    %v136 = vperm.slane %v130, 0
    %v138 = vadd.f32 %v134, %v136
    %v139 = vmax.f32 %v138, 0.0
    %v140 = vld [vmem:[#allocation4 + $0x10] sm:$0xff]
    %v141 = vld [vmem:[#allocation4 + $0x18] sm:$0xff]
    %v142 = vld [vmem:[#allocation4 + $0x20] sm:$0xff]
    %v143 = vld [vmem:[#allocation4 + $0x28] sm:$0xff]
    %v144 = vld [vmem:[#allocation4 + $0x30] sm:$0xff]
    %v145 = vld [vmem:[#allocation4 + $0x38] sm:$0xff]
    %v146 = vld [vmem:[#allocation4 + $0x40] sm:$0xff]
    %v147 = vld [vmem:[#allocation4 + $0x48] sm:$0xff]
    %v148 = vld [vmem:[#allocation6 + $0x3] sm:$0x1]
    %v150 = vperm.slane %v148, 0
    %v153 = vsel %vm90, %v139, 0
    %155 = vmatpush.msra.mxu0 0.0
    %156 = vmatpush.msra.mxu0 0.0
    %157 = vmatpush.msra.mxu0 0.0
    %158 = vmatpush.msra.mxu0 0.0
    %159 = vmatpush.msra.mxu0 0.0
    %160 = vmatpush.msra.mxu0 0.0
    %161 = vmatpush.msra.mxu0 0.0
    %162 = vmatpush.msra.mxu0 0.0
    %163 = vmatpush.msra.mxu0 %v147
    %164 = vmatpush.msra.mxu0 %v146
    %165 = vmatpush.msra.mxu0 %v145
    %166 = vmatpush.msra.mxu0 %v144
    %167 = vmatpush.msra.mxu0 %v143
    %168 = vmatpush.msra.mxu0 %v142
    %169 = vmatpush.msra.mxu0 %v141
    %170 = vmatpush.msra.mxu0 %v140
    %171 = vmatmul.f32.gmra.mxu0 %v153
    %v172 = vpop.f32.mrf.mxu0
    %v173 = vadd.f32 %v150, %v172
    %174 = vdwg.mxu0
    %v175 = vld [vmem:[#allocation6 + $0x4] sm:$0x1]
    %v176 = vld [vmem:[#allocation6 + $0x5] sm:$0x1]
    %v177 = vsel %vm90, %v173, 0.0
    %v178 = vrot.slane %v177, 4
    %v179 = vadd.f32 %v177, %v178
    %v180 = vrot.slane %v179, 2
    %v181 = vadd.f32 %v179, %v180
    %v182 = vrot.slane %v181, 1
    %v183 = vadd.f32 %v181, %v182
    %v184 = vmul.f32 %v183, %v104
    %v185 = vmul.f32 %v173, %v173
    %v186 = vsel %vm90, %v185, 0.0
    %v187 = vrot.slane %v186, 4
    %v188 = vadd.f32 %v186, %v187
    %v189 = vrot.slane %v188, 2
    %v190 = vadd.f32 %v188, %v189
    %v191 = vrot.slane %v190, 1
    %v192 = vadd.f32 %v190, %v191
    %v193 = vmul.f32 %v192, %v104
    %v194 = vmul.f32 %v184, %v184
    %v195 = vsub.f32 %v193, %v194
    %v196 = vadd.f32 %v195, 1e-05
    %v197 = vrsqrt.pop %v196
    %v198 = vmul.f32 %v197, %v196
    %v199 = vmul.f32 %v198, %v197
    %v200 = vmul.f32 0.5, %v199
    %v201 = vsub.f32 1.5, %v200
    %v202 = vmul.f32 %v197, %v201
    %vm203 = vweird.f32 %v196
    %vm204 = vweird.f32 %v197
    %vm205 = vmor %vm203, %vm204
    %v206 = vsel %vm205, %v197, %v202
    %v207 = vmul.f32 %v175, %v206
    %v208 = vmul.f32 %v184, %v207
    %v209 = vsub.f32 %v176, %v208
    %v211 = vperm.slane %v207, 0
    %v213 = vmul.f32 %v173, %v211
    %v215 = vperm.slane %v209, 0
    %v217 = vadd.f32 %v213, %v215
    %v218 = vmax.f32 %v217, 0.0
    %v219 = vld [vmem:[#allocation4 + $0x50] sm:$0xff]
    %v220 = vld [vmem:[#allocation4 + $0x58] sm:$0xff]
    %v221 = vld [vmem:[#allocation4 + $0x60] sm:$0xff]
    %v222 = vld [vmem:[#allocation4 + $0x68] sm:$0xff]
    %v223 = vld [vmem:[#allocation4 + $0x70] sm:$0xff]
    %v224 = vld [vmem:[#allocation4 + $0x78] sm:$0xff]
    %v225 = vld [vmem:[#allocation4 + $0x80] sm:$0xff]
    %v226 = vld [vmem:[#allocation4 + $0x88] sm:$0xff]
    %v227 = vld [vmem:[#allocation6 + $0x6] sm:$0x1]
    %v229 = vperm.slane %v227, 0
    %v232 = vsel %vm90, %v218, 0
    %234 = vmatpush.msra.mxu0 0.0
    %235 = vmatpush.msra.mxu0 0.0
    %236 = vmatpush.msra.mxu0 0.0
    %237 = vmatpush.msra.mxu0 0.0
    %238 = vmatpush.msra.mxu0 0.0
    %239 = vmatpush.msra.mxu0 0.0
    %240 = vmatpush.msra.mxu0 0.0
    %241 = vmatpush.msra.mxu0 0.0
    %242 = vmatpush.msra.mxu0 %v226
    %243 = vmatpush.msra.mxu0 %v225
    %244 = vmatpush.msra.mxu0 %v224
    %245 = vmatpush.msra.mxu0 %v223
    %246 = vmatpush.msra.mxu0 %v222
    %247 = vmatpush.msra.mxu0 %v221
    %248 = vmatpush.msra.mxu0 %v220
    %249 = vmatpush.msra.mxu0 %v219
    %250 = vmatmul.f32.gmra.mxu0 %v232
    %v251 = vpop.f32.mrf.mxu0
    %v252 = vadd.f32 %v229, %v251
    %253 = vdwg.mxu0
    %v254 = vld [vmem:[#allocation6 + $0x7] sm:$0x1]
    %v255 = vld [vmem:[#allocation6 + $0x8] sm:$0x1]
    %v256 = vrot.slane %v252, 4
    %v257 = vadd.f32 %v252, %v256
    %v258 = vrot.slane %v257, 2
    %v259 = vadd.f32 %v257, %v258
    %v260 = vrot.slane %v259, 1
    %v261 = vadd.f32 %v259, %v260
    %v262 = vmul.f32 %v261, %v104
    %v263 = vmul.f32 %v252, %v252
    %v264 = vrot.slane %v263, 4
    %v265 = vadd.f32 %v263, %v264
    %v266 = vrot.slane %v265, 2
    %v267 = vadd.f32 %v265, %v266
    %v268 = vrot.slane %v267, 1
    %v269 = vadd.f32 %v267, %v268
    %v270 = vmul.f32 %v269, %v104
    %v271 = vmul.f32 %v262, %v262
    %v272 = vsub.f32 %v270, %v271
    %v273 = vadd.f32 %v272, 1e-05
    %v274 = vrsqrt.pop %v273
    %v275 = vmul.f32 %v274, %v273
    %v276 = vmul.f32 %v275, %v274
    %v277 = vmul.f32 0.5, %v276
    %v278 = vsub.f32 1.5, %v277
    %v279 = vmul.f32 %v274, %v278
    %vm280 = vweird.f32 %v273
    %vm281 = vweird.f32 %v274
    %vm282 = vmor %vm280, %vm281
    %v283 = vsel %vm282, %v274, %v279
    %v284 = vmul.f32 %v254, %v283
    %v285 = vmul.f32 %v262, %v284
    %v286 = vsub.f32 %v255, %v285
    %v288 = vperm.slane %v284, 0
    %v290 = vmul.f32 %v252, %v288
    %v292 = vperm.slane %v286, 0
    %v294 = vadd.f32 %v290, %v292
    %v295 = vmax.f32 %v294, 0.0
    %v296 = vld [vmem:[#allocation4 + $0x90] sm:$0xff]
    %v297 = vld [vmem:[#allocation4 + $0x98] sm:$0xff]
    %v298 = vld [vmem:[#allocation4 + $0xa0] sm:$0xff]
    %v299 = vld [vmem:[#allocation4 + $0xa8] sm:$0xff]
    %v300 = vld [vmem:[#allocation4 + $0xb0] sm:$0xff]
    %v301 = vld [vmem:[#allocation4 + $0xb8] sm:$0xff]
    %v302 = vld [vmem:[#allocation4 + $0xc0] sm:$0xff]
    %v303 = vld [vmem:[#allocation4 + $0xc8] sm:$0xff]
    %v304 = vld [vmem:[#allocation4 + $0xd0] sm:$0xff]
    %v305 = vld [vmem:[#allocation4 + $0xd8] sm:$0xff]
    %v306 = vld [vmem:[#allocation4 + $0xe0] sm:$0xff]
    %v307 = vld [vmem:[#allocation4 + $0xe8] sm:$0xff]
    %v308 = vld [vmem:[#allocation4 + $0xf0] sm:$0xff]
    %v309 = vld [vmem:[#allocation4 + $0xf8] sm:$0xff]
    %v310 = vld [vmem:[#allocation4 + $0x100] sm:$0xff]
    %v311 = vld [vmem:[#allocation4 + $0x108] sm:$0xff]
    %v312 = vld [vmem:[#allocation6 + $0x9] sm:$0x1]
    %v314 = vperm.slane %v312, 0
    %316 = vmatpush.msra.mxu0 %v311
    %317 = vmatpush.msra.mxu0 %v310
    %318 = vmatpush.msra.mxu0 %v309
    %319 = vmatpush.msra.mxu0 %v308
    %320 = vmatpush.msra.mxu0 %v307
    %321 = vmatpush.msra.mxu0 %v306
    %322 = vmatpush.msra.mxu0 %v305
    %323 = vmatpush.msra.mxu0 %v304
    %324 = vmatpush.msra.mxu0 %v303
    %325 = vmatpush.msra.mxu0 %v302
    %326 = vmatpush.msra.mxu0 %v301
    %327 = vmatpush.msra.mxu0 %v300
    %328 = vmatpush.msra.mxu0 %v299
    %329 = vmatpush.msra.mxu0 %v298
    %330 = vmatpush.msra.mxu0 %v297
    %331 = vmatpush.msra.mxu0 %v296
    %332 = vmatmul.f32.gmra.mxu0 %v295
    %v333 = vpop.f32.mrf.mxu0
    %v334 = vadd.f32 %v314, %v333
    %335 = vdwg.mxu0
    %v336 = vld [vmem:[#allocation6 + $0xa] sm:$0x3]
    %v337 = vld [vmem:[#allocation6 + $0xc] sm:$0x3]
    %v338 = vrot.slane %v295, 4
    %v339 = vadd.f32 %v295, %v338
    %v340 = vrot.slane %v339, 2
    %v341 = vadd.f32 %v339, %v340
    %v342 = vrot.slane %v341, 1
    %v343 = vadd.f32 %v341, %v342
    %v344 = vsel %vm90, %v218, 0.0
    %v345 = vrot.slane %v344, 4
    %v346 = vadd.f32 %v344, %v345
    %v347 = vrot.slane %v346, 2
    %v348 = vadd.f32 %v346, %v347
    %v349 = vrot.slane %v348, 1
    %v350 = vadd.f32 %v348, %v349
    %v351 = vmul.f32 %v343, %v104
    %v352 = vmul.f32 %v350, %v104
    %v353 = vmul.f32 %v295, %v295
    %v354 = vmul.f32 %v218, %v218
    %v355 = vrot.slane %v353, 4
    %v356 = vadd.f32 %v353, %v355
    %v357 = vrot.slane %v356, 2
    %v358 = vadd.f32 %v356, %v357
    %v359 = vrot.slane %v358, 1
    %v360 = vadd.f32 %v358, %v359
    %v361 = vsel %vm90, %v354, 0.0
    %v362 = vrot.slane %v361, 4
    %v363 = vadd.f32 %v361, %v362
    %v364 = vrot.slane %v363, 2
    %v365 = vadd.f32 %v363, %v364
    %v366 = vrot.slane %v365, 1
    %v367 = vadd.f32 %v365, %v366
    %v368 = vmul.f32 %v360, %v104
    %v369 = vmul.f32 %v367, %v104
    %v370 = vmul.f32 %v351, %v351
    %v371 = vmul.f32 %v352, %v352
    %v372 = vsub.f32 %v368, %v370
    %v373 = vsub.f32 %v369, %v371
    %v374 = vadd.f32 %v372, 1e-05
    %v375 = vadd.f32 %v373, 1e-05
    %v376 = vrsqrt.pop %v374
    %v377 = vmul.f32 %v376, %v374
    %v378 = vmul.f32 %v377, %v376
    %v379 = vmul.f32 0.5, %v378
    %v380 = vsub.f32 1.5, %v379
    %v381 = vmul.f32 %v376, %v380
    %vm382 = vweird.f32 %v374
    %vm383 = vweird.f32 %v376
    %vm384 = vmor %vm382, %vm383
    %v385 = vsel %vm384, %v376, %v381
    %v386 = vrsqrt.pop %v375
    %v387 = vmul.f32 %v386, %v375
    %v388 = vmul.f32 %v387, %v386
    %v389 = vmul.f32 0.5, %v388
    %v390 = vsub.f32 1.5, %v389
    %v391 = vmul.f32 %v386, %v390
    %vm392 = vweird.f32 %v375
    %vm393 = vweird.f32 %v386
    %vm394 = vmor %vm392, %vm393
    %v395 = vsel %vm394, %v386, %v391
    %v398 = vrot.slane %v395, 7
    %vm399 = vcmask 1040384
    %v400 = vsel %vm399, %v385, %v398
    %v402 = vmul.f32 %v336, %v400
    %v404 = vperm.slane %v402, 0
    %v405 = vperm.slane %v402, 1
    %v408 = vmul.f32 %v351, %v404
    %v409 = vmul.f32 %v352, %v405
    %v412 = vrot.slane %v409, 7
    %v413 = vsel %vm399, %v408, %v412
    %v415 = vsub.f32 %v337, %v413
    %v416 = vmul.f32 %v295, %v404
    %v417 = vmul.f32 %v218, %v405
    %v419 = vperm.slane %v415, 0
    %v420 = vperm.slane %v415, 1
    %v423 = vadd.f32 %v416, %v419
    %v424 = vadd.f32 %v417, %v420
    %v425 = vld [vmem:[#allocation4 + $0x110] sm:$0xff]
    %v426 = vld [vmem:[#allocation4 + $0x118] sm:$0xff]
    %v427 = vld [vmem:[#allocation4 + $0x120] sm:$0xff]
    %v428 = vld [vmem:[#allocation4 + $0x128] sm:$0xff]
    %v429 = vld [vmem:[#allocation4 + $0x130] sm:$0xff]
    %v430 = vld [vmem:[#allocation4 + $0x138] sm:$0xff]
    %v431 = vld [vmem:[#allocation4 + $0x140] sm:$0xff]
    %v432 = vld [vmem:[#allocation4 + $0x148] sm:$0xff]
    %v433 = vld [vmem:[#allocation4 + $0x150] sm:$0xff]
    %v434 = vld [vmem:[#allocation4 + $0x158] sm:$0xff]
    %v435 = vld [vmem:[#allocation4 + $0x160] sm:$0xff]
    %v436 = vld [vmem:[#allocation4 + $0x168] sm:$0xff]
    %v437 = vld [vmem:[#allocation4 + $0x170] sm:$0xff]
    %v438 = vld [vmem:[#allocation4 + $0x178] sm:$0xff]
    %v439 = vld [vmem:[#allocation4 + $0x180] sm:$0xff]
    %v440 = vld [vmem:[#allocation4 + $0x188] sm:$0xff]
    %v441 = vld [vmem:[#allocation4 + $0x190] sm:$0xff]
    %v442 = vld [vmem:[#allocation4 + $0x198] sm:$0xff]
    %v443 = vld [vmem:[#allocation4 + $0x1a0] sm:$0xff]
    %v444 = vld [vmem:[#allocation4 + $0x1a8] sm:$0xff]
    %v445 = vld [vmem:[#allocation4 + $0x1b0] sm:$0xff]
    %v446 = vld [vmem:[#allocation4 + $0x1b8] sm:$0xff]
    %v447 = vld [vmem:[#allocation4 + $0x1c0] sm:$0xff]
    %v448 = vld [vmem:[#allocation4 + $0x1c8] sm:$0xff]
    %v449 = vld [vmem:[#allocation6 + $0xe] sm:$0x1]
    %v451 = vperm.slane %v449, 0
    %v454 = vsel %vm90, %v424, 0
    %456 = vmatpush.msra.mxu0 %v440
    %457 = vmatpush.msra.mxu0 %v439
    %458 = vmatpush.msra.mxu0 %v438
    %459 = vmatpush.msra.mxu0 %v437
    %460 = vmatpush.msra.mxu0 %v436
    %461 = vmatpush.msra.mxu0 %v435
    %462 = vmatpush.msra.mxu0 %v434
    %463 = vmatpush.msra.mxu0 %v433
    %464 = vmatpush.msra.mxu0 %v432
    %465 = vmatpush.msra.mxu0 %v431
    %466 = vmatpush.msra.mxu0 %v430
    %467 = vmatpush.msra.mxu0 %v429
    %468 = vmatpush.msra.mxu0 %v428
    %469 = vmatpush.msra.mxu0 %v427
    %470 = vmatpush.msra.mxu0 %v426
    %471 = vmatpush.msra.mxu0 %v425
    %472 = vmatmul.f32.gmra.mxu0 %v423
    %v473 = vpop.f32.mrf.mxu0
    %v474 = vadd.f32 %v451, %v473
    %475 = vdwg.mxu0
    %476 = vmatpush.msra.mxu0 0.0
    %477 = vmatpush.msra.mxu0 0.0
    %478 = vmatpush.msra.mxu0 0.0
    %479 = vmatpush.msra.mxu0 0.0
    %480 = vmatpush.msra.mxu0 0.0
    %481 = vmatpush.msra.mxu0 0.0
    %482 = vmatpush.msra.mxu0 0.0
    %483 = vmatpush.msra.mxu0 0.0
    %484 = vmatpush.msra.mxu0 %v448
    %485 = vmatpush.msra.mxu0 %v447
    %486 = vmatpush.msra.mxu0 %v446
    %487 = vmatpush.msra.mxu0 %v445
    %488 = vmatpush.msra.mxu0 %v444
    %489 = vmatpush.msra.mxu0 %v443
    %490 = vmatpush.msra.mxu0 %v442
    %491 = vmatpush.msra.mxu0 %v441
    %492 = vmatmul.f32.gmra.mxu0 %v454
    %v493 = vpop.f32.mrf.mxu0
    %v494 = vadd.f32 %v474, %v493
    %495 = vdwg.mxu0
    %v496 = vld [vmem:[#allocation4 + $0x1d0] sm:$0xff]
    %v497 = vld [vmem:[#allocation4 + $0x1d8] sm:$0xf]
    %v498 = vld [vmem:[#allocation6 + $0xf] sm:$0x1]
    %v500 = vperm.slane %v498, 0
    %vm502 = vcmask 97280
    %v504 = vsel %vm502, %v334, 0
    %vm506 = vcmask 1043456
    %v508 = vsel %vm506, %v497, 0
    %510 = vmatpush.msra.mxu0 0.0
    %511 = vmatpush.msra.mxu0 0.0
    %512 = vmatpush.msra.mxu0 0.0
    %513 = vmatpush.msra.mxu0 0.0
    %514 = vmatpush.msra.mxu0 0.0
    %515 = vmatpush.msra.mxu0 0.0
    %516 = vmatpush.msra.mxu0 0.0
    %517 = vmatpush.msra.mxu0 0.0
    %518 = vmatpush.msra.mxu0 0.0
    %519 = vmatpush.msra.mxu0 0.0
    %520 = vmatpush.msra.mxu0 0.0
    %521 = vmatpush.msra.mxu0 0.0
    %522 = vmatpush.msra.mxu0 0.0
    %523 = vmatpush.msra.mxu0 0.0
    %524 = vmatpush.msra.mxu0 %v508
    %525 = vmatpush.msra.mxu0 %v496
    %526 = vmatmul.f32.gmra.mxu0 %v504
    %v527 = vpop.f32.mrf.mxu0
    %v528 = vadd.f32 %v500, %v527
    %529 = vdwg.mxu0
    %vm530 = vcmask 23552
    %v531 = vsel %vm530, %v494, -inf
    %532 = vmax.xlane.f32.xlu0 %v531
    %v533 = vpop.xlane.xlu0 %532
    %v534 = vsub.f32 %v494, %v533
    %v535 = vmul.f32 %v534, 1.442695
    %v536 = vpow.pop %v535
    %v537 = vsel %vm530, %v536, 0.0
    %538 = vadd.xlane.f32.xlu0 %v537
    %v539 = vpop.xlane.xlu0 %538
    %v540 = vrcp.pop %v539
    %v541 = vmul.f32 %v539, %v540
    %v542 = vsub.f32 2.0, %v541
    %v543 = vmul.f32 %v540, %v542
    %v544 = vmul.f32 %v536, %v543
    %vm545 = vcmask 48152
    %v546 = vsel %vm545, %v494, -inf
    %547 = vmax.xlane.f32.xlu0 %v546
    %v548 = vpop.xlane.xlu0 %547
    %v549 = vsub.f32 %v494, %v548
    %v550 = vmul.f32 %v549, 1.442695
    %v551 = vpow.pop %v550
    %553 = vrot.lane.b32.xlu0 %v551, 125
    %v554 = vpop.permute.xlu0 %553
    %v556 = vsel %vm530, %v554, 0.0
    %557 = vadd.xlane.f32.xlu0 %v556
    %v558 = vpop.xlane.xlu0 %557
    %v559 = vrcp.pop %v558
    %v560 = vmul.f32 %v558, %v559
    %v561 = vsub.f32 2.0, %v560
    %v562 = vmul.f32 %v559, %v561
    %v563 = vmul.f32 %v551, %v562
    %v564 = vsel %vm530, %v528, -inf
    %565 = vmax.xlane.f32.xlu0 %v564
    %v566 = vpop.xlane.xlu0 %565
    %v567 = vsub.f32 %v528, %v566
    %v568 = vmul.f32 %v567, 1.442695
    %v569 = vpow.pop %v568
    %v570 = vsel %vm530, %v569, 0.0
    %571 = vadd.xlane.f32.xlu0 %v570
    %v572 = vpop.xlane.xlu0 %571
    %v573 = vrcp.pop %v572
    %v574 = vmul.f32 %v572, %v573
    %v575 = vsub.f32 2.0, %v574
    %v576 = vmul.f32 %v573, %v575
    %v577 = vmul.f32 %v569, %v576
    %578 = vst.msk [vmem:[%s3] sm:$0xff] %vm530, %v334
    %v579 = vmul.f32 %v334, 1.442695
    %v580 = vpow.pop %v579
    %581 = vst.msk [vmem:[%s3] sm:$0xff] %vm545, %v580
    %583 = vrot.lane.b32.xlu0 %v544, 6
    %v584 = vpop.permute.xlu0 %583
    %vm586 = vcmask 72752
    %587 = vst.msk [vmem:[%s3] sm:$0xff] %vm586, %v584
    %588 = vrot.lane.b32.xlu0 %v334, 3
    %v589 = vpop.permute.xlu0 %588
    %vm591 = vcmask 97352
    %592 = vst.msk [vmem:[%s3] sm:$0xff] %vm591, %v589
    %594 = vrot.lane.b32.xlu0 %v580, 3
    %v595 = vpop.permute.xlu0 %594
    %vm597 = vcmask 121952
    %598 = vst.msk [vmem:[%s3] sm:$0xff] %vm597, %v595
    %600 = vrot.lane.b32.xlu0 %v563, 12
    %v601 = vpop.permute.xlu0 %600
    %vm603 = vcmask 146552
    %604 = vst.msk [vmem:[%s3] sm:$0xff] %vm603, %v601
    %606 = vrot.lane.b32.xlu0 %v577, 18
    %v607 = vpop.permute.xlu0 %606
    %vm609 = vcmask 171152
    %610 = vst.msk [vmem:[%s3] sm:$0xff] %vm609, %v607
    // Predicated region
    $region26: #{umg_forward.1} parent=1 // pred_check
      _
    $region27: #{umg_forward.1} parent=1 // pred_check_branch
      %612 = sbr.rel (0) target = $region29
    $region28: #{umg_forward.1} parent=1 // pred_region
      _
    $region29: #{umg_forward.1} parent=1 // pred_fallthru
      _
    // Predicated region
    $region30: #{umg_forward.1} parent=1 // pred_check
      _
    $region31: #{umg_forward.1} parent=1 // pred_check_branch
      %614 = sbr.rel (0) target = $region33
    $region32: #{umg_forward.1} parent=1 // pred_region
      _
    $region33: #{umg_forward.1} parent=1 // pred_fallthru
      _
    %615 = vsyncpa [#allocation3], 1
    %616 = vsyncpa [#allocation5], 1

</llo_original>
